<compile_context>
chip_gen: v7x
topology: tpu7x:2x2x1
jax: 0.10.0
libtpu: 0.0.40
codegen_flags: <defaults>
</compile_context>

<pallas_src>
import jax
import jax.numpy as jnp
from jax.experimental import pallas as pl
from jax.experimental.pallas import tpu as pltpu


_TM_MAX = 2048  # folded-row tile cap; ~1 MiB x + ~1 MiB out per buffer at width 128


def _round_up(x, m):
    return ((x + m - 1) // m) * m


def _affine_kernel(x_ref, w_ref, b_ref, o_ref):
    # x_ref: [TM, KW], w_ref: [KW, NW], b_ref: [1, NW], o_ref: [TM, NW]
    acc = jnp.dot(x_ref[...], w_ref[...], preferred_element_type=jnp.float32)
    o_ref[...] = (acc + b_ref[...]).astype(o_ref.dtype)


def fadapter_forward(X, w, b):
    """FAdapter.forward: X = (ts, lr); returns learner(ts).

    ts: [batch, seq, feature] float32
    w : [feature, hidden]     float32  (learner weight)
    b : [hidden]              float32  (learner bias)
    """
    ts, _lr = X  # lr is unused by FAdapter.forward, same as the PyTorch module
    batch, seq, feature = ts.shape
    hidden = w.shape[1]
    M = batch * seq

    # Fold factor: pack FOLD consecutive rows into one 128-lane row when the
    # feature width divides 128; otherwise fall back to the un-folded layout
    # with full-dim last axes (no hidden padding either way).
    if feature <= 128 and 128 % feature == 0:
        fold = 128 // feature
    else:
        fold = 1

    x2d = ts.reshape(M, feature)
    M_f = _round_up(M, fold)
    if M_f != M:
        # At most (fold-1) zero rows; negligible vs. M and sliced off below.
        x2d = jnp.pad(x2d, ((0, M_f - M), (0, 0)))

    R = M_f // fold           # folded row count
    KW = fold * feature       # folded input width  (128 when folded)
    NW = fold * hidden        # folded output width

    x_f = x2d.reshape(R, KW)  # free reshape of a row-major array

    if fold > 1:
        # Block-diagonal weight: W_blk[a*F+f, c*H+h] = (a==c) * w[f, h]
        eye = jnp.eye(fold, dtype=w.dtype)
        w_f = jnp.einsum("ac,fh->afch", eye, w).reshape(KW, NW)
        b_f = jnp.tile(b, fold).reshape(1, NW)
    else:
        w_f = w
        b_f = b.reshape(1, NW)

    # Row tile: multiple of 8 sublanes (or the full dim for tiny inputs),
    # capped at _TM_MAX, and sized so there are >=2 grid steps when R allows
    # it (lets the "parallel" axis shard across both v7x TensorCores).
    if R < 8:
        TM = R  # block == full array dim, allowed by the (8,128) rule
    else:
        TM = min(_TM_MAX, _round_up(pl.cdiv(R, 2), 8))
    grid = (pl.cdiv(R, TM),)

    cost = pl.CostEstimate(
        flops=2 * R * KW * NW,          # what the MXU actually executes
        bytes_accessed=4 * (R * KW + KW * NW + NW + R * NW),
        transcendentals=0,
    )

    out_f = pl.pallas_call(
        _affine_kernel,
        out_shape=jax.ShapeDtypeStruct((R, NW), ts.dtype),
        grid=grid,
        in_specs=[
            # Activations: tiled over folded rows, auto-pipelined HBM -> VMEM.
            pl.BlockSpec((TM, KW), lambda i: (i, 0)),
            # Weight / bias: constant index_map -> VMEM-resident across steps.
            pl.BlockSpec((KW, NW), lambda i: (0, 0)),
            pl.BlockSpec((1, NW), lambda i: (0, 0)),
        ],
        out_specs=pl.BlockSpec((TM, NW), lambda i: (i, 0)),
        compiler_params=pltpu.CompilerParams(
            dimension_semantics=("parallel",),
        ),
        cost_estimate=cost,
    )(x_f, w_f, b_f)

    # Free reshape back to [M_f, hidden]; slice only if we padded M.
    out2d = out_f.reshape(M_f, hidden)
    if M_f != M:
        out2d = out2d[:M]
    return out2d.reshape(batch, seq, hidden)


if __name__ == "__main__":
    # Small shapes consistent with ts = [batch, seq, feature]
    batch, seq, feature, hidden = 2, 8, 32, 32

    key = jax.random.PRNGKey(0)
    k_ts, k_lr, k_w, k_b = jax.random.split(key, 4)

    ts = jax.random.normal(k_ts, (batch, seq, feature), dtype=jnp.float32)
    lr = jax.random.normal(k_lr, (batch, feature), dtype=jnp.float32)  # unused

    # TODO(synk): the real learner is an injected sub-module; modeled here as
    # a per-timestep Linear(feature -> hidden).
    w = jax.random.normal(k_w, (feature, hidden), dtype=jnp.float32) * 0.02
    b = jax.random.normal(k_b, (hidden,), dtype=jnp.float32) * 0.02

    out = fadapter_forward((ts, lr), w, b)
    out = jax.block_until_ready(out)

    # Correctness check against plain-JAX reference
    ref = (ts.reshape(-1, feature) @ w + b).reshape(batch, seq, hidden)
    assert out.shape == (batch, seq, hidden)
    assert jnp.allclose(out, ref, atol=1e-5, rtol=1e-5)

    print("KERNEL_OK")
</pallas_src>

<mosaic_0001>
module attributes {stable_mosaic.version = 11 : i64} {
  func.func @_affine_kernel(%arg0: i32, %arg1: memref<4x128xf32, #tpu.memory_space<vmem>>, %arg2: memref<128x128xf32, #tpu.memory_space<vmem>>, %arg3: memref<1x128xf32, #tpu.memory_space<vmem>>, %arg4: memref<4x128xf32, #tpu.memory_space<vmem>>) attributes {dimension_semantics = [#tpu.dimension_semantics<parallel>], iteration_bounds = array<i64: 1>, scalar_prefetch = 0 : i64, scratch_operands = 0 : i64, tpu.core_type = #tpu.core_type<tc>, window_params = [{transform_indices = @transform_0, window_bounds = array<i64: 4, 128>}, {pipeline_mode = #tpu.pipeline_mode<synchronous>, transform_indices = @transform_1, window_bounds = array<i64: 128, 128>}, {pipeline_mode = #tpu.pipeline_mode<synchronous>, transform_indices = @transform_2, window_bounds = array<i64: 1, 128>}, {transform_indices = @transform_3, window_bounds = array<i64: 4, 128>}]} {
    %c0 = arith.constant 0 : index
    %c0_0 = arith.constant 0 : index
    %0 = vector.load %arg1[%c0, %c0_0] : memref<4x128xf32, #tpu.memory_space<vmem>>, vector<4x128xf32>
    %c0_1 = arith.constant 0 : index
    %c0_2 = arith.constant 0 : index
    %1 = vector.load %arg2[%c0_1, %c0_2] : memref<128x128xf32, #tpu.memory_space<vmem>>, vector<128x128xf32>
    %cst = arith.constant dense<0.000000e+00> : vector<4x128xf32>
    %2 = tpu.matmul %0, %1, %cst {dimension_numbers = #tpu.dot_dimension_numbers<[1], [0], [0], [1], [0, 0, 1, 1], [], []>} : vector<4x128xf32>, vector<128x128xf32>, vector<4x128xf32> -> vector<4x128xf32>
    %c0_3 = arith.constant 0 : index
    %c0_4 = arith.constant 0 : index
    %3 = vector.load %arg3[%c0_3, %c0_4] : memref<1x128xf32, #tpu.memory_space<vmem>>, vector<1x128xf32>
    %4 = vector.broadcast %3 : vector<1x128xf32> to vector<4x128xf32>
    %5 = arith.addf %2, %4 : vector<4x128xf32>
    %c0_5 = arith.constant 0 : index
    %c0_6 = arith.constant 0 : index
    %6 = vector.load %arg4[%c0_5, %c0_6] : memref<4x128xf32, #tpu.memory_space<vmem>>, vector<4x128xf32>
    tpu.vector_store %arg4[%c0_5, %c0_6], %5 {strides = array<i32>} : memref<4x128xf32, #tpu.memory_space<vmem>>, vector<4x128xf32>,
    return
  }
  func.func @transform_0(%arg0: i32) -> (i32, i32) {
    %c0_i32 = arith.constant 0 : i32
    %c0_i32_0 = arith.constant 0 : i32
    return %arg0, %c0_i32 : i32, i32
  }
  func.func @transform_1(%arg0: i32) -> (i32, i32) {
    %c0_i32 = arith.constant 0 : i32
    %c0_i32_0 = arith.constant 0 : i32
    %c0_i32_1 = arith.constant 0 : i32
    return %c0_i32, %c0_i32_0 : i32, i32
  }
  func.func @transform_2(%arg0: i32) -> (i32, i32) {
    %c0_i32 = arith.constant 0 : i32
    %c0_i32_0 = arith.constant 0 : i32
    %c0_i32_1 = arith.constant 0 : i32
    return %c0_i32, %c0_i32_0 : i32, i32
  }
  func.func @transform_3(%arg0: i32) -> (i32, i32) {
    %c0_i32 = arith.constant 0 : i32
    %c0_i32_0 = arith.constant 0 : i32
    return %arg0, %c0_i32 : i32, i32
  }
}

</mosaic_0001>

<llo_original>
// kernel: tpu_custom_call.1
$region0: #{tpu_custom_call.1}
  #allocation0 [shape = 'u32[]', space=smem, size = 0x4, offset = 0x4, fixed_abs, tag = 'smem constant byte address 0x4 - core index']
  #allocation1 [shape = 'u32[144,128]{1,0:T(1,128)}', space=vmem, size = 0x12000, scoped, tag = 'internal scratch']
  %s0 = inlined_call_operand.hbm [shape: f32[4,128], index: 0, kind: input, shape index: {}]
  %s1 = inlined_call_operand.hbm [shape: f32[128,128], index: 1, kind: input, shape index: {}]
  %s2 = inlined_call_operand.vmem [shape: f32[1,128], index: 2, kind: input, shape index: {}]
  %s3 = inlined_call_operand.hbm [shape: f32[4,128], index: 3, kind: output, shape index: {}]
  %s4 = sld [smem:[#allocation0]]
  $region30: #{tpu_custom_call.1} parent=0
    _
  %s6 = ssub.s32 1, %s4
  %s7 = scalar_select 0, %s6, %s4
  $region1: #{tpu_custom_call.1} parent=0
    #allocation2 [shape = 'u8[2048]{0}', space=vmem, size = 0x800, scoped, tag = 'input window, operand 0, single buffered']
    #allocation3 [shape = 's32[1]{0}', space=sflag, size = 0x4, scoped, tag = 'scoped memory for tpu_custom_call.1']
    #allocation4 [shape = 's32[1]{0}', space=sflag, size = 0x4, scoped, tag = 'scoped memory for tpu_custom_call.1']
    #allocation5 [shape = 'u8[65536]{0}', space=vmem, size = 0x10000, scoped, tag = 'input window, operand 1, single buffered']
    #allocation6 [shape = 's32[1]{0}', space=sflag, size = 0x4, scoped, tag = 'scoped memory for tpu_custom_call.1']
    #allocation7 [shape = 'u8[2048]{0}', space=vmem, size = 0x800, scoped, tag = 'output window, operand 0, single buffered']
    %8 = vsyncpa [#allocation3], 0
    %9 = vsyncpa [#allocation6], 0
    %10 = vsyncpa [#allocation4], 0
    // Predicated region
    $region2: #{tpu_custom_call.1} parent=1 // pred_check
      _
    $region3: #{tpu_custom_call.1} parent=1 // pred_check_branch
      %12 = sbr.rel (0) target = $region5
    $region4: #{tpu_custom_call.1} parent=1 // pred_region
      %s14 = ssub.s32 64, 64
      %15 = vsyncadd [#allocation3], %s14
      %s17 = sshll.u32 [#allocation2], 4
      %s18 = int_to_ptr.vmem [resolvable:$true] %s17
      %20 = dma.hbm_to_vmem [thread:$0]  %s0, 64, %s18, [#allocation3]
    $region5: #{tpu_custom_call.1} parent=1 // pred_fallthru
      _
    // Predicated region
    $region6: #{tpu_custom_call.1} parent=1 // pred_check
      _
    $region7: #{tpu_custom_call.1} parent=1 // pred_check_branch
      %22 = sbr.rel (0) target = $region9
    $region8: #{tpu_custom_call.1} parent=1 // pred_region
      %s24 = ssub.s32 2048, 2048
      %25 = vsyncadd [#allocation6], %s24
      %s26 = sshll.u32 [#allocation5], 4
      %s27 = int_to_ptr.vmem [resolvable:$true] %s26
      %32 = dma.hbm_to_vmem [thread:$0]  %s1, 2048, %s27, [#allocation6], 128, 128, 8
    $region9: #{tpu_custom_call.1} parent=1 // pred_fallthru
      _
    // Predicated region
    $region10: #{tpu_custom_call.1} parent=1 // pred_check
      _
    $region11: #{tpu_custom_call.1} parent=1 // pred_check_branch
      %34 = sbr.rel (0) target = $region13
    $region12: #{tpu_custom_call.1} parent=1 // pred_region
      _
    $region13: #{tpu_custom_call.1} parent=1 // pred_fallthru
      _
    // Predicated region
    $region14: #{tpu_custom_call.1} parent=1 // pred_check
      _
    $region15: #{tpu_custom_call.1} parent=1 // pred_check_branch
      %36 = sbr.rel (0) target = $region17
    $region16: #{tpu_custom_call.1} parent=1 // pred_region
      %37 = dma.done [#allocation3], 64
    $region17: #{tpu_custom_call.1} parent=1 // pred_fallthru
      _
    // Predicated region
    $region18: #{tpu_custom_call.1} parent=1 // pred_check
      _
    $region19: #{tpu_custom_call.1} parent=1 // pred_check_branch
      %39 = sbr.rel (0) target = $region21
    $region20: #{tpu_custom_call.1} parent=1 // pred_region
      %40 = dma.done [#allocation6], 2048
    $region21: #{tpu_custom_call.1} parent=1 // pred_fallthru
      _
    %v41 = vld [vmem:[#allocation2] sm:$0xf]
    %v42 = vld [vmem:[#allocation5] sm:$0xff]
    %v43 = vld [vmem:[#allocation5 + $0x8] sm:$0xff]
    %v44 = vld [vmem:[#allocation5 + $0x10] sm:$0xff]
    %v45 = vld [vmem:[#allocation5 + $0x18] sm:$0xff]
    %v46 = vld [vmem:[#allocation5 + $0x20] sm:$0xff]
    %v47 = vld [vmem:[#allocation5 + $0x28] sm:$0xff]
    %v48 = vld [vmem:[#allocation5 + $0x30] sm:$0xff]
    %v49 = vld [vmem:[#allocation5 + $0x38] sm:$0xff]
    %v50 = vld [vmem:[#allocation5 + $0x40] sm:$0xff]
    %v51 = vld [vmem:[#allocation5 + $0x48] sm:$0xff]
    %v52 = vld [vmem:[#allocation5 + $0x50] sm:$0xff]
    %v53 = vld [vmem:[#allocation5 + $0x58] sm:$0xff]
    %v54 = vld [vmem:[#allocation5 + $0x60] sm:$0xff]
    %v55 = vld [vmem:[#allocation5 + $0x68] sm:$0xff]
    %v56 = vld [vmem:[#allocation5 + $0x70] sm:$0xff]
    %v57 = vld [vmem:[#allocation5 + $0x78] sm:$0xff]
    %v58 = vld [vmem:[%s2] sm:$0x1]
    %v60 = vlaneseq
    %v61 = vshrl.u32 %v60, 7
    %v62 = vsub.s32 0, %v61
    %v63 = vrot.slane %v58, %v62
    %65 = vmatprep.subr.mxu0 0.0
    %66 = vmatpush1.msra.mxu0 %v42
    %67 = vmatprep.subr.mxu0 0.0
    %68 = vmatpush1.msra.mxu0 %v43
    %69 = vmatprep.subr.mxu0 0.0
    %70 = vmatpush1.msra.mxu0 %v44
    %71 = vmatprep.subr.mxu0 0.0
    %72 = vmatpush1.msra.mxu0 %v45
    %73 = vmatprep.subr.mxu0 0.0
    %74 = vmatpush1.msra.mxu0 %v46
    %75 = vmatprep.subr.mxu0 0.0
    %76 = vmatpush1.msra.mxu0 %v47
    %77 = vmatprep.subr.mxu0 0.0
    %78 = vmatpush1.msra.mxu0 %v48
    %79 = vmatprep.subr.mxu0 0.0
    %80 = vmatpush1.msra.mxu0 %v49
    %81 = vmatprep.subr.mxu0 0.0
    %82 = vmatpush1.msra.mxu0 %v50
    %83 = vmatprep.subr.mxu0 0.0
    %84 = vmatpush1.msra.mxu0 %v51
    %85 = vmatprep.subr.mxu0 0.0
    %86 = vmatpush1.msra.mxu0 %v52
    %87 = vmatprep.subr.mxu0 0.0
    %88 = vmatpush1.msra.mxu0 %v53
    %89 = vmatprep.subr.mxu0 0.0
    %90 = vmatpush1.msra.mxu0 %v54
    %91 = vmatprep.subr.mxu0 0.0
    %92 = vmatpush1.msra.mxu0 %v55
    %93 = vmatprep.subr.mxu0 0.0
    %94 = vmatpush1.msra.mxu0 %v56
    %95 = vmatprep.subr.mxu0 0.0
    %96 = vmatpush1.msra.mxu0 %v57
    %97 = vmatprep.subr.mxu0 0.0
    %98 = vmatpush1.msra.mxu0 0.0
    %99 = vmatprep.subr.mxu0 0.0
    %100 = vmatpush1.msra.mxu0 0.0
    %101 = vmatprep.subr.mxu0 0.0
    %102 = vmatpush1.msra.mxu0 0.0
    %103 = vmatprep.subr.mxu0 0.0
    %104 = vmatpush1.msra.mxu0 0.0
    %105 = vmatprep.subr.mxu0 0.0
    %106 = vmatpush1.msra.mxu0 0.0
    %107 = vmatprep.subr.mxu0 0.0
    %108 = vmatpush1.msra.mxu0 0.0
    %109 = vmatprep.subr.mxu0 0.0
    %110 = vmatpush1.msra.mxu0 0.0
    %111 = vmatprep.subr.mxu0 0.0
    %112 = vmatpush1.msra.mxu0 0.0
    %113 = vmatprep.subr.mxu0 0.0
    %114 = vmatpush1.msra.mxu0 0.0
    %115 = vmatprep.subr.mxu0 0.0
    %116 = vmatpush1.msra.mxu0 0.0
    %117 = vmatprep.subr.mxu0 0.0
    %118 = vmatpush1.msra.mxu0 0.0
    %119 = vmatprep.subr.mxu0 0.0
    %120 = vmatpush1.msra.mxu0 0.0
    %121 = vmatprep.subr.mxu0 0.0
    %122 = vmatpush1.msra.mxu0 0.0
    %123 = vmatprep.subr.mxu0 0.0
    %124 = vmatpush1.msra.mxu0 0.0
    %125 = vmatprep.subr.mxu0 0.0
    %126 = vmatpush1.msra.mxu0 0.0
    %127 = vmatprep.subr.mxu0 0.0
    %128 = vmatpush1.msra.mxu0 0.0
    %129 = vmatprep.mubr.f32.mxu0 0.0
    %130 = vmatmul.mubr.f32.gmra.mrb[0].mxu0 %v41
    %v131 = vpop.f32.mrb[0].mxu0
    %v132 = vadd.f32 %v63, %v131
    %v133 = vpop.f32.mrb[0].mxu0
    %134 = vdwg.mxu0
    %135 = vst [vmem:[#allocation7] sm:$0xf] %v132
    // Predicated region
    $region22: #{tpu_custom_call.1} parent=1 // pred_check
      _
    $region23: #{tpu_custom_call.1} parent=1 // pred_check_branch
      %137 = sbr.rel (0) target = $region25
    $region24: #{tpu_custom_call.1} parent=1 // pred_region
      %s139 = ssub.s32 64, 64
      %140 = vsyncadd [#allocation4], %s139
      %s142 = sshll.u32 [#allocation7], 4
      %s143 = int_to_ptr.vmem [resolvable:$true] %s142
      %145 = dma.vmem_to_hbm [thread:$0]  %s143, 64, %s3, [#allocation4]
    $region25: #{tpu_custom_call.1} parent=1 // pred_fallthru
      _
    // Predicated region
    $region26: #{tpu_custom_call.1} parent=1 // pred_check
      _
    $region27: #{tpu_custom_call.1} parent=1 // pred_check_branch
      %147 = sbr.rel (0) target = $region29
    $region28: #{tpu_custom_call.1} parent=1 // pred_region
      %148 = dma.done [#allocation4], 64
    $region29: #{tpu_custom_call.1} parent=1 // pred_fallthru
      _
    %149 = vsyncpa [#allocation3], 1
    %150 = vsyncpa [#allocation6], 1
    %151 = vsyncpa [#allocation4], 1

</llo_original>
